<compile_context>
chip_gen: v7x
topology: tpu7x:2x2x1
jax: 0.10.0
libtpu: 0.0.40
codegen_flags: <defaults>
</compile_context>

<pallas_src>
import jax
import jax.numpy as jnp
from jax.experimental import pallas as pl
from jax.experimental.pallas import tpu as pltpu


# --------------------------------------------------------------------------- #
# Kernel: pure broadcast multiply, mem-bound streaming over batch tiles.
# --------------------------------------------------------------------------- #
def _adadrop_apply_kernel(mask_ref, x_ref, out_ref):
    # (1, C) mask broadcasts over the (block_rows, C) tile.
    out_ref[...] = x_ref[...] * mask_ref[...]


# --------------------------------------------------------------------------- #
# Wrapper-side (tiny, O(N*C)) statistic -> keep probabilities.
# --------------------------------------------------------------------------- #
def _dropout_keep_probs(grads, scaling):
    """Per-feature keep probabilities, shape (1, C), float32."""
    g = jnp.mean(jnp.abs(grads.astype(jnp.float32)), axis=0, keepdims=True)
    if scaling == "inverse":
        s = jnp.sum(g, axis=-1, keepdims=True)
        # zero-guard: all-zero gradient history -> keep everything (p = 1)
        return jnp.where(s > 0.0, 1.0 - g / jnp.where(s > 0.0, s, 1.0),
                         jnp.ones_like(g))
    if scaling == "softmax":
        return jax.nn.softmax(g, axis=-1)
    if scaling == "norm":
        m = jnp.max(g, axis=-1, keepdims=True)
        return jnp.where(m > 0.0, g / jnp.where(m > 0.0, m, 1.0), g)
    raise ValueError(f"invalid scaling: {scaling}")


def _pick_block_rows(B, C, dtype):
    """Tile rows: <= ~8 MiB/tile, sublane-multiple, >= ~4 grid steps if B allows."""
    itemsize = jnp.dtype(dtype).itemsize
    sublane = {4: 8, 2: 16, 1: 32}.get(itemsize, 8)
    bytes_per_row = max(C * itemsize, 1)
    target_rows = max(sublane, (8 * 1024 * 1024) // bytes_per_row)
    rows_for_steps = -(-B // 4)                     # cdiv(B, 4)
    rows = min(target_rows, rows_for_steps)
    rows = max(sublane, (rows // sublane) * sublane)
    return B if rows >= B else rows


# --------------------------------------------------------------------------- #
# Public forward.
# --------------------------------------------------------------------------- #
def adadrop_forward(x, grads, key, *, scaling="softmax", training=True,
                    block_rows=None, donate_x=False):
    """AdaDrop forward.

    x:     (B, C) activations
    grads: (N, C) recent raw gradients (|.| and mean over N taken here) or None
    key:   jax PRNG key for the Bernoulli draw
    donate_x: alias x's HBM buffer to the output (only if caller no longer
              needs x).
    """
    if (not training) or grads is None or grads.shape[0] == 0:
        return x

    B, C = x.shape

    # --- (1, C) keep-mask, computed once in the wrapper and cast to x.dtype --
    p = _dropout_keep_probs(grads, scaling)                   # (1, C) f32
    u = jax.random.uniform(key, (1, C), dtype=jnp.float32)    # Bernoulli draw
    mask = (u < p).astype(x.dtype)                            # (1, C)

    if block_rows is None:
        block_rows = _pick_block_rows(B, C, x.dtype)

    tile_bytes = block_rows * C * jnp.dtype(x.dtype).itemsize
    # double-buffered in + out tiles + (1, C) mask + slack; capped at 48 MiB
    # (leaves headroom on v7x's 64 MiB physical VMEM).
    vmem_limit = int(min(48 << 20, max(16 << 20, 4 * tile_bytes + (2 << 20))))

    return pl.pallas_call(
        _adadrop_apply_kernel,
        out_shape=jax.ShapeDtypeStruct(x.shape, x.dtype),
        grid=(pl.cdiv(B, block_rows),),
        in_specs=[
            pl.BlockSpec((1, C), lambda i: (0, 0)),            # mask: constant
            pl.BlockSpec((block_rows, C), lambda i: (i, 0)),   # x tile
        ],
        out_specs=pl.BlockSpec((block_rows, C), lambda i: (i, 0)),
        compiler_params=pltpu.CompilerParams(
            dimension_semantics=("parallel",),   # shard batch tiles over TCs
            vmem_limit_bytes=vmem_limit,
        ),
        input_output_aliases=({1: 0} if donate_x else {}),
    )(mask, x)


# --------------------------------------------------------------------------- #
# Plain-JAX reference (same uniform draw) for verification.
# --------------------------------------------------------------------------- #
def _adadrop_reference(x, grads, key, scaling):
    p = _dropout_keep_probs(grads, scaling)
    u = jax.random.uniform(key, (1, x.shape[1]), dtype=jnp.float32)
    return x * (u < p).astype(x.dtype)


if __name__ == "__main__":
    key = jax.random.PRNGKey(0)
    kx, kg, km, kx2 = jax.random.split(key, 4)

    # Small single-tile case: lane-dense C, short gradient history.
    B, C, N = 8, 128, 4
    x = jax.random.normal(kx, (B, C), dtype=jnp.float32)
    grads = jax.random.normal(kg, (N, C), dtype=jnp.float32)

    for scaling in ("inverse", "softmax", "norm"):
        out = jax.block_until_ready(
            adadrop_forward(x, grads, km, scaling=scaling, training=True))
        assert out.shape == x.shape and out.dtype == x.dtype
        # every element is either kept verbatim or zeroed
        assert bool(jnp.all((out == x) | (out == 0.0)))
        ref = _adadrop_reference(x, grads, km, scaling)
        assert bool(jnp.allclose(out, ref, rtol=1e-6, atol=1e-6)), scaling

    # Multi-tile path: heuristic picks block_rows=48 -> grid of 5 steps with a
    # partial last block (exercises the tiled / megacore-parallel path).
    B2, C2 = 200, 256
    x2 = jax.random.normal(kx2, (B2, C2), dtype=jnp.float32)
    grads2 = jax.random.normal(kg, (N, C2), dtype=jnp.float32)
    out2 = jax.block_until_ready(
        adadrop_forward(x2, grads2, km, scaling="softmax", training=True))
    ref2 = _adadrop_reference(x2, grads2, km, "softmax")
    assert bool(jnp.allclose(out2, ref2, rtol=1e-6, atol=1e-6))

    # Eval path / empty gradient history -> identity.
    out_eval = adadrop_forward(x, grads, km, scaling="softmax", training=False)
    assert bool(jnp.all(jax.block_until_ready(out_eval) == x))
    out_empty = adadrop_forward(x, grads[:0], km, scaling="softmax",
                                training=True)
    assert bool(jnp.all(jax.block_until_ready(out_empty) == x))

    print("KERNEL_OK")
</pallas_src>

<mosaic_0001>
module attributes {stable_mosaic.version = 11 : i64} {
  func.func @_adadrop_apply_kernel(%arg0: i32, %arg1: memref<1x128xf32, #tpu.memory_space<vmem>>, %arg2: memref<8x128xf32, #tpu.memory_space<vmem>>, %arg3: memref<8x128xf32, #tpu.memory_space<vmem>>) attributes {dimension_semantics = [#tpu.dimension_semantics<parallel>], iteration_bounds = array<i64: 1>, scalar_prefetch = 0 : i64, scratch_operands = 0 : i64, tpu.core_type = #tpu.core_type<tc>, window_params = [{pipeline_mode = #tpu.pipeline_mode<synchronous>, transform_indices = @transform_0, window_bounds = array<i64: 1, 128>}, {transform_indices = @transform_1, window_bounds = array<i64: 8, 128>}, {transform_indices = @transform_2, window_bounds = array<i64: 8, 128>}]} {
    %c0 = arith.constant 0 : index
    %c0_0 = arith.constant 0 : index
    %0 = vector.load %arg2[%c0, %c0_0] : memref<8x128xf32, #tpu.memory_space<vmem>>, vector<8x128xf32>
    %c0_1 = arith.constant 0 : index
    %c0_2 = arith.constant 0 : index
    %1 = vector.load %arg1[%c0_1, %c0_2] : memref<1x128xf32, #tpu.memory_space<vmem>>, vector<1x128xf32>
    %2 = vector.broadcast %1 : vector<1x128xf32> to vector<8x128xf32>
    %3 = arith.mulf %0, %2 : vector<8x128xf32>
    %c0_3 = arith.constant 0 : index
    %c0_4 = arith.constant 0 : index
    %4 = vector.load %arg3[%c0_3, %c0_4] : memref<8x128xf32, #tpu.memory_space<vmem>>, vector<8x128xf32>
    tpu.vector_store %arg3[%c0_3, %c0_4], %3 {strides = array<i32>} : memref<8x128xf32, #tpu.memory_space<vmem>>, vector<8x128xf32>,
    return
  }
  func.func @transform_0(%arg0: i32) -> (i32, i32) {
    %c0_i32 = arith.constant 0 : i32
    %c0_i32_0 = arith.constant 0 : i32
    %c0_i32_1 = arith.constant 0 : i32
    return %c0_i32, %c0_i32_0 : i32, i32
  }
  func.func @transform_1(%arg0: i32) -> (i32, i32) {
    %c0_i32 = arith.constant 0 : i32
    %c0_i32_0 = arith.constant 0 : i32
    return %arg0, %c0_i32 : i32, i32
  }
  func.func @transform_2(%arg0: i32) -> (i32, i32) {
    %c0_i32 = arith.constant 0 : i32
    %c0_i32_0 = arith.constant 0 : i32
    return %arg0, %c0_i32 : i32, i32
  }
}

</mosaic_0001>

<llo_original>
// kernel: tpu_custom_call.1
$region0: #{tpu_custom_call.1}
  #allocation0 [shape = 'u32[]', space=smem, size = 0x4, offset = 0x4, fixed_abs, tag = 'smem constant byte address 0x4 - core index']
  #allocation1 [shape = 'u32[144,128]{1,0:T(1,128)}', space=vmem, size = 0x12000, scoped, tag = 'internal scratch']
  %s0 = inlined_call_operand.hbm [shape: f32[1,128], index: 0, kind: input, shape index: {}]
  %s1 = inlined_call_operand.hbm [shape: f32[8,128], index: 1, kind: input, shape index: {}]
  %s2 = inlined_call_operand.hbm [shape: f32[8,128], index: 2, kind: output, shape index: {}]
  %s3 = sld [smem:[#allocation0]]
  $region26: #{tpu_custom_call.1} parent=0
    _
  %s5 = ssub.s32 1, %s3
  %s6 = scalar_select 0, %s5, %s3
  $region1: #{tpu_custom_call.1} parent=0
    #allocation2 [shape = 'u8[512]{0}', space=vmem, size = 0x400, scoped, tag = 'input window, operand 0, single buffered']
    #allocation3 [shape = 's32[1]{0}', space=sflag, size = 0x4, scoped, tag = 'scoped memory for tpu_custom_call.1']
    #allocation4 [shape = 's32[1]{0}', space=sflag, size = 0x4, scoped, tag = 'scoped memory for tpu_custom_call.1']
    #allocation5 [shape = 'u8[4096]{0}', space=vmem, size = 0x1000, scoped, tag = 'input window, operand 1, single buffered']
    #allocation6 [shape = 's32[1]{0}', space=sflag, size = 0x4, scoped, tag = 'scoped memory for tpu_custom_call.1']
    #allocation7 [shape = 'u8[4096]{0}', space=vmem, size = 0x1000, scoped, tag = 'output window, operand 0, single buffered']
    %7 = vsyncpa [#allocation3], 0
    %8 = vsyncpa [#allocation6], 0
    %9 = vsyncpa [#allocation4], 0
    // Predicated region
    $region2: #{tpu_custom_call.1} parent=1 // pred_check
      _
    $region3: #{tpu_custom_call.1} parent=1 // pred_check_branch
      %11 = sbr.rel (0) target = $region5
    $region4: #{tpu_custom_call.1} parent=1 // pred_region
      %s13 = ssub.s32 16, 16
      %14 = vsyncadd [#allocation3], %s13
      %s16 = sshll.u32 [#allocation2], 4
      %s17 = int_to_ptr.vmem [resolvable:$true] %s16
      %19 = dma.hbm_to_vmem [thread:$0]  %s0, 16, %s17, [#allocation3]
    $region5: #{tpu_custom_call.1} parent=1 // pred_fallthru
      _
    // Predicated region
    $region6: #{tpu_custom_call.1} parent=1 // pred_check
      _
    $region7: #{tpu_custom_call.1} parent=1 // pred_check_branch
      %21 = sbr.rel (0) target = $region9
    $region8: #{tpu_custom_call.1} parent=1 // pred_region
      %s23 = ssub.s32 128, 128
      %24 = vsyncadd [#allocation6], %s23
      %s26 = sshll.u32 [#allocation5], 4
      %s27 = int_to_ptr.vmem [resolvable:$true] %s26
      %29 = dma.hbm_to_vmem [thread:$0]  %s1, 128, %s27, [#allocation6]
    $region9: #{tpu_custom_call.1} parent=1 // pred_fallthru
      _
    // Predicated region
    $region10: #{tpu_custom_call.1} parent=1 // pred_check
      _
    $region11: #{tpu_custom_call.1} parent=1 // pred_check_branch
      %31 = sbr.rel (0) target = $region13
    $region12: #{tpu_custom_call.1} parent=1 // pred_region
      %32 = dma.done [#allocation3], 16
    $region13: #{tpu_custom_call.1} parent=1 // pred_fallthru
      _
    // Predicated region
    $region14: #{tpu_custom_call.1} parent=1 // pred_check
      _
    $region15: #{tpu_custom_call.1} parent=1 // pred_check_branch
      %34 = sbr.rel (0) target = $region17
    $region16: #{tpu_custom_call.1} parent=1 // pred_region
      %35 = dma.done [#allocation6], 128
    $region17: #{tpu_custom_call.1} parent=1 // pred_fallthru
      _
    %v36 = vld [vmem:[#allocation5] sm:$0xff]
    %v37 = vld [vmem:[#allocation2] sm:$0x1]
    %v39 = vlaneseq
    %v40 = vshrl.u32 %v39, 7
    %v41 = vsub.s32 0, %v40
    %v42 = vrot.slane %v37, %v41
    %v44 = vmul.f32 %v36, %v42
    %45 = vst [vmem:[#allocation7] sm:$0xff] %v44
    // Predicated region
    $region18: #{tpu_custom_call.1} parent=1 // pred_check
      _
    $region19: #{tpu_custom_call.1} parent=1 // pred_check_branch
      %47 = sbr.rel (0) target = $region21
    $region20: #{tpu_custom_call.1} parent=1 // pred_region
      %s49 = ssub.s32 128, 128
      %50 = vsyncadd [#allocation4], %s49
      %s52 = sshll.u32 [#allocation7], 4
      %s53 = int_to_ptr.vmem [resolvable:$true] %s52
      %55 = dma.vmem_to_hbm [thread:$0]  %s53, 128, %s2, [#allocation4]
    $region21: #{tpu_custom_call.1} parent=1 // pred_fallthru
      _
    // Predicated region
    $region22: #{tpu_custom_call.1} parent=1 // pred_check
      _
    $region23: #{tpu_custom_call.1} parent=1 // pred_check_branch
      %57 = sbr.rel (0) target = $region25
    $region24: #{tpu_custom_call.1} parent=1 // pred_region
      %58 = dma.done [#allocation4], 128
    $region25: #{tpu_custom_call.1} parent=1 // pred_fallthru
      _
    %59 = vsyncpa [#allocation3], 1
    %60 = vsyncpa [#allocation6], 1
    %61 = vsyncpa [#allocation4], 1

</llo_original>
